<compile_context>
chip_gen: v7x
topology: tpu7x:2x2x1
jax: 0.10.0
libtpu: 0.0.40
codegen_flags: <defaults>
</compile_context>

<pallas_src>
import jax
import jax.numpy as jnp
from jax.experimental import pallas as pl
from jax.experimental.pallas import tpu as pltpu


def _proj_kernel(rot_ref, dT_ref, outT_ref):
    # rot_ref:  (1, 3, 3)   rotation matrix x[b] for the current batch row
    # dT_ref:   (1, 3, Nt)  coordinate-major tile of the point cloud (points on lanes)
    # outT_ref: (1, 3, Nt)  coordinate-major tile of (data @ x[b]^T)^T == x[b] @ data^T
    r = rot_ref[0]                       # (3, 3)
    dT = dT_ref[0]                       # (3, Nt)
    # outT[k, n] = sum_j r[k, j] * dT[j, n]  -- pure VPU broadcast math, exact f32,
    # lane-dense (no 3-wide MXU matmul).
    outT = (r[:, 0:1] * dT[0:1, :]
            + r[:, 1:2] * dT[1:2, :]
            + r[:, 2:3] * dT[2:3, :])
    outT_ref[0] = outT.astype(outT_ref.dtype)


def euler_to_rmat(alpha, beta, gamma):
    # TODO(synk): `euler_to_rmat` is not defined in the provided source; using the
    # common extrinsic X-Y-Z convention R = Rz(gamma) @ Ry(beta) @ Rx(alpha).
    ca, sa = jnp.cos(alpha), jnp.sin(alpha)
    cb, sb = jnp.cos(beta), jnp.sin(beta)
    cg, sg = jnp.cos(gamma), jnp.sin(gamma)
    row0 = jnp.stack([cg * cb, cg * sb * sa - sg * ca, cg * sb * ca + sg * sa], -1)
    row1 = jnp.stack([sg * cb, sg * sb * sa + cg * ca, sg * sb * ca - cg * sa], -1)
    row2 = jnp.stack([-sb, cb * sa, cb * ca], -1)
    return jnp.stack([row0, row1, row2], -2)          # (..., 3, 3)


class PointCloudProj:
    """JAX/Pallas port of the PyTorch PointCloudProj module."""

    def __init__(self, data, so3=True, n_tile=1024):
        data = jnp.asarray(data, jnp.float32)
        assert data.shape[-1] == 3 and data.ndim in (2, 3)
        self.so3 = so3
        self.per_batch = data.ndim == 3
        self.n_points = data.shape[-2]

        # Lane-aligned point tile (multiple of 128, capped by n_tile).
        np128 = pl.cdiv(self.n_points, 128) * 128
        n_tile = max(128, (min(int(n_tile), np128) // 128) * 128)
        self.n_tile = n_tile
        self.n_padded = pl.cdiv(self.n_points, n_tile) * n_tile

        # Coordinate-major layout (Bd, 3, N_padded), built ONCE here (data is a
        # fixed module buffer): all kernel-side work becomes lane-dense.
        dT = jnp.swapaxes(data, -1, -2)
        if not self.per_batch:
            dT = dT[None]                              # (1, 3, N)
        if self.n_padded != self.n_points:
            dT = jnp.pad(dT, ((0, 0), (0, 0), (0, self.n_padded - self.n_points)))
        self.dataT = dT                                # (Bd, 3, Np)

    def __call__(self, x):
        x = jnp.asarray(x, jnp.float32)
        if self.so3:
            rot = x                                    # (B, 3, 3)
        else:
            rot = euler_to_rmat(x[..., 0], x[..., 1], x[..., 2])
        assert rot.ndim == 3 and rot.shape[-2:] == (3, 3)
        B = rot.shape[0]
        if self.per_batch and self.dataT.shape[0] != B:
            raise ValueError("per-batch data requires data.shape[0] == x.shape[0]")

        n_tile, n_padded = self.n_tile, self.n_padded
        n_tiles = n_padded // n_tile

        # Shared cloud: data tile index is constant across the (inner) batch axis,
        # so Pallas re-uses the VMEM block instead of re-DMAing it per batch row.
        if self.per_batch:
            dmap = lambda i, b: (b, 0, i)
        else:
            dmap = lambda i, b: (0, 0, i)

        outT = pl.pallas_call(
            _proj_kernel,
            out_shape=jax.ShapeDtypeStruct((B, 3, n_padded), jnp.float32),
            grid_spec=pltpu.PrefetchScalarGridSpec(
                num_scalar_prefetch=0,
                grid=(n_tiles, B),                      # batch innermost -> tile reuse
                in_specs=[
                    pl.BlockSpec((1, 3, 3), lambda i, b: (b, 0, 0)),   # rotation
                    pl.BlockSpec((1, 3, n_tile), dmap),                # data^T tile
                ],
                out_specs=pl.BlockSpec((1, 3, n_tile), lambda i, b: (b, 0, i)),
            ),
            compiler_params=pltpu.CompilerParams(
                dimension_semantics=("parallel", "parallel")),
        )(rot, self.dataT)

        # Layout plumbing back to the PyTorch output layout (B, N, 3).
        return jnp.swapaxes(outT, -1, -2)[:, : self.n_points, :]


if __name__ == "__main__":
    key = jax.random.PRNGKey(0)
    kd, kx, kb, ke = jax.random.split(key, 4)

    B, N = 2, 512
    data = jax.random.normal(kd, (N, 3), jnp.float32)       # shared point cloud
    x = jax.random.normal(kx, (B, 3, 3), jnp.float32)        # batch of matrices

    # so3=True path (shared cloud).
    out = jax.block_until_ready(PointCloudProj(data, so3=True)(x))
    ref = jnp.sum(data[None, :, None, :] * x[:, None, :, :], axis=-1)   # data @ x^T (exact f32)
    assert out.shape == (B, N, 3), out.shape
    assert jnp.allclose(out, ref, atol=1e-5, rtol=1e-5), "so3=True mismatch"

    # Per-batch clouds with a non-128-multiple N (exercises the padding path).
    N2 = 200
    data_b = jax.random.normal(kb, (B, N2, 3), jnp.float32)
    out_b = jax.block_until_ready(PointCloudProj(data_b, so3=True)(x))
    ref_b = jnp.sum(data_b[:, :, None, :] * x[:, None, :, :], axis=-1)
    assert out_b.shape == (B, N2, 3), out_b.shape
    assert jnp.allclose(out_b, ref_b, atol=1e-5, rtol=1e-5), "per-batch mismatch"

    # so3=False (Euler angle) path.
    eul = jax.random.normal(ke, (B, 3), jnp.float32)
    rot_e = euler_to_rmat(eul[..., 0], eul[..., 1], eul[..., 2])
    out_e = jax.block_until_ready(PointCloudProj(data, so3=False)(eul))
    ref_e = jnp.sum(data[None, :, None, :] * rot_e[:, None, :, :], axis=-1)
    assert jnp.allclose(out_e, ref_e, atol=1e-5, rtol=1e-5), "so3=False mismatch"

    print("KERNEL_OK")
</pallas_src>

<mosaic_0001>
module attributes {stable_mosaic.version = 11 : i64} {
  func.func @_proj_kernel(%arg0: i32, %arg1: i32, %arg2: memref<1x3x3xf32, #tpu.memory_space<vmem>>, %arg3: memref<1x3x512xf32, #tpu.memory_space<vmem>>, %arg4: memref<1x3x512xf32, #tpu.memory_space<vmem>>) attributes {dimension_semantics = [#tpu.dimension_semantics<parallel>, #tpu.dimension_semantics<parallel>], iteration_bounds = array<i64: 1, 2>, scalar_prefetch = 0 : i64, scratch_operands = 0 : i64, tpu.core_type = #tpu.core_type<tc>, window_params = [{transform_indices = @transform_0, window_bounds = array<i64: 1, 3, 3>}, {transform_indices = @transform_1, window_bounds = array<i64: 1, 3, 512>}, {transform_indices = @transform_2, window_bounds = array<i64: 1, 3, 512>}]} {
    %c0 = arith.constant 0 : index
    %c0_0 = arith.constant 0 : index
    %c0_1 = arith.constant 0 : index
    %0 = vector.load %arg2[%c0, %c0_0, %c0_1] : memref<1x3x3xf32, #tpu.memory_space<vmem>>, vector<1x3x3xf32>
    %1 = vector.shape_cast %0 : vector<1x3x3xf32> to vector<3x3xf32>
    %c0_2 = arith.constant 0 : index
    %c0_3 = arith.constant 0 : index
    %c0_4 = arith.constant 0 : index
    %2 = vector.load %arg3[%c0_2, %c0_3, %c0_4] : memref<1x3x512xf32, #tpu.memory_space<vmem>>, vector<1x3x512xf32>
    %3 = vector.shape_cast %2 : vector<1x3x512xf32> to vector<3x512xf32>
    %4 = vector.extract_strided_slice %1 {offsets = [0, 0], sizes = [3, 1], strides = [1, 1]} : vector<3x3xf32> to vector<3x1xf32>
    %5 = vector.extract_strided_slice %3 {offsets = [0, 0], sizes = [1, 512], strides = [1, 1]} : vector<3x512xf32> to vector<1x512xf32>
    %6 = vector.broadcast %4 : vector<3x1xf32> to vector<3x512xf32>
    %7 = vector.broadcast %5 : vector<1x512xf32> to vector<3x512xf32>
    %8 = arith.mulf %6, %7 : vector<3x512xf32>
    %9 = vector.extract_strided_slice %1 {offsets = [0, 1], sizes = [3, 1], strides = [1, 1]} : vector<3x3xf32> to vector<3x1xf32>
    %10 = vector.extract_strided_slice %3 {offsets = [1, 0], sizes = [1, 512], strides = [1, 1]} : vector<3x512xf32> to vector<1x512xf32>
    %11 = vector.broadcast %9 : vector<3x1xf32> to vector<3x512xf32>
    %12 = vector.broadcast %10 : vector<1x512xf32> to vector<3x512xf32>
    %13 = arith.mulf %11, %12 : vector<3x512xf32>
    %14 = arith.addf %8, %13 : vector<3x512xf32>
    %15 = vector.extract_strided_slice %1 {offsets = [0, 2], sizes = [3, 1], strides = [1, 1]} : vector<3x3xf32> to vector<3x1xf32>
    %16 = vector.extract_strided_slice %3 {offsets = [2, 0], sizes = [1, 512], strides = [1, 1]} : vector<3x512xf32> to vector<1x512xf32>
    %17 = vector.broadcast %15 : vector<3x1xf32> to vector<3x512xf32>
    %18 = vector.broadcast %16 : vector<1x512xf32> to vector<3x512xf32>
    %19 = arith.mulf %17, %18 : vector<3x512xf32>
    %20 = arith.addf %14, %19 : vector<3x512xf32>
    %c0_5 = arith.constant 0 : index
    %c0_6 = arith.constant 0 : index
    %c0_7 = arith.constant 0 : index
    %21 = vector.load %arg4[%c0_5, %c0_6, %c0_7] : memref<1x3x512xf32, #tpu.memory_space<vmem>>, vector<1x3x512xf32>
    %22 = vector.shape_cast %21 : vector<1x3x512xf32> to vector<3x512xf32>
    %23 = vector.shape_cast %20 : vector<3x512xf32> to vector<1x3x512xf32>
    tpu.vector_store %arg4[%c0_5, %c0_6, %c0_7], %23 {strides = array<i32>} : memref<1x3x512xf32, #tpu.memory_space<vmem>>, vector<1x3x512xf32>,
    return
  }
  func.func @transform_0(%arg0: i32, %arg1: i32) -> (i32, i32, i32) {
    %c0_i32 = arith.constant 0 : i32
    %c0_i32_0 = arith.constant 0 : i32
    %c0_i32_1 = arith.constant 0 : i32
    return %arg1, %c0_i32, %c0_i32_0 : i32, i32, i32
  }
  func.func @transform_1(%arg0: i32, %arg1: i32) -> (i32, i32, i32) {
    %c0_i32 = arith.constant 0 : i32
    %c0_i32_0 = arith.constant 0 : i32
    %c0_i32_1 = arith.constant 0 : i32
    return %c0_i32, %c0_i32_0, %arg0 : i32, i32, i32
  }
  func.func @transform_2(%arg0: i32, %arg1: i32) -> (i32, i32, i32) {
    %c0_i32 = arith.constant 0 : i32
    %c0_i32_0 = arith.constant 0 : i32
    return %arg1, %c0_i32, %arg0 : i32, i32, i32
  }
}

</mosaic_0001>

<llo_original>
// kernel: tpu_custom_call.1
$region0: #{tpu_custom_call.1}
  #allocation0 [shape = 'u32[]', space=smem, size = 0x4, offset = 0x4, fixed_abs, tag = 'smem constant byte address 0x4 - core index']
  #allocation1 [shape = 'u32[144,128]{1,0:T(1,128)}', space=vmem, size = 0x12000, scoped, tag = 'internal scratch']
  %s0 = inlined_call_operand.vmem [shape: f32[2,3,3], index: 0, kind: input, shape index: {}]
  %s1 = inlined_call_operand.vmem [shape: f32[1,3,512], index: 1, kind: input, shape index: {}]
  %s2 = inlined_call_operand.vmem [shape: f32[2,3,512], index: 2, kind: output, shape index: {}]
  %s3 = sld [smem:[#allocation0]]
  $region41: #{tpu_custom_call.1} parent=0
    _
  %s5 = ssub.s32 1, %s3
  %s6 = scalar_select 0, %s5, %s3
  loop: start=0, step=1, limit=4
  $region2: #{tpu_custom_call.1} parent=0 // loop_pre_header
    _
  $region3: #{tpu_custom_call.1} parent=0 // loop_header
    %s8 = sphi 0, %s12
    %p9 = scmp.ge.s32.totalorder %s8, 4
    %s15 = sphi 0, %s27
    %s16 = sphi 0, %s23
    %s17 = sphi 0, %s15
    %s18 = sphi 0, %s16
    %s19 = sphi 0, %s17
    %s20 = sphi 0, %s18
    %s30 = sphi 0, %s32
    %s33 = sphi 0, %s30
    %s34 = sphi 0, %s33
    %s50 = sphi 0, %s34
    %s56 = sphi 0, %s58
    %s59 = sphi 0, %s56
    %s60 = sphi 0, %s59
    %s76 = sphi 0, %s60
    %s84 = sphi 0, %s86
    %s87 = sphi 0, %s84
    %s88 = sphi 0, %s87
    %s104 = sphi 0, %s88
  $region4: #{tpu_custom_call.1} parent=0 // loop_header_branch
    %11 = sbr.rel (%p9) target = $region8
  $region5: #{tpu_custom_call.1} parent=0 // loop_body
    %s13 = ssub.s32 %s8, 1
    %s14 = ssub.s32 %s8, 2
    %s21 = sadd.s32 1, %s16
    %p22 = scmp.ge.s32.totalorder %s21, 2
    %s23 = scalar_select %p22, 0, %s21
    %s24 = sadd.s32 1, %s15
    %s25 = scalar_select %p22, %s24, %s15
    %p26 = scmp.ge.s32.totalorder %s25, 1
    %s27 = scalar_select %p26, 0, %s25
    %s28 = ssub.s32 %s16, %s23
    %p29 = scmp.eq.s32.totalorder %s28, 0
    %s31 = sadd.s32 %s30, 1
    %s32 = scalar_select %p29, %s30, %s31
    %p35 = pneg %p29
    %p36 = scmp.eq.s32.totalorder %s8, 1
    %p37 = por %p35, %p36
    %p38 = scmp.ne.s32.totalorder %s30, %s33
    %p39 = scmp.eq.s32.totalorder %s8, 0
    %p40 = por %p38, %p39
    %p41 = scmp.ne.s32.totalorder %s30, %s33
    %p42 = scmp.eq.s32.totalorder %s13, 1
    %p43 = por %p41, %p42
    %p44 = scmp.ne.s32.totalorder %s33, %s34
    %p45 = scmp.eq.s32.totalorder %s13, 0
    %p46 = por %p44, %p45
    %p47 = scmp.ne.s32.totalorder %s33, %s34
    %p48 = scmp.eq.s32.totalorder %s14, 1
    %p49 = por %p47, %p48
    %p51 = scmp.ne.s32.totalorder %s34, %s50
    %p52 = scmp.eq.s32.totalorder %s14, 0
    %p53 = por %p51, %p52
    %s54 = ssub.s32 %s15, %s27
    %p55 = scmp.eq.s32.totalorder %s54, 0
    %s57 = sadd.s32 %s56, 1
    %s58 = scalar_select %p55, %s56, %s57
    %p61 = pneg %p55
    %p62 = scmp.eq.s32.totalorder %s8, 1
    %p63 = por %p61, %p62
    %p64 = scmp.ne.s32.totalorder %s56, %s59
    %p65 = scmp.eq.s32.totalorder %s8, 0
    %p66 = por %p64, %p65
    %p67 = scmp.ne.s32.totalorder %s56, %s59
    %p68 = scmp.eq.s32.totalorder %s13, 1
    %p69 = por %p67, %p68
    %p70 = scmp.ne.s32.totalorder %s59, %s60
    %p71 = scmp.eq.s32.totalorder %s13, 0
    %p72 = por %p70, %p71
    %p73 = scmp.ne.s32.totalorder %s59, %s60
    %p74 = scmp.eq.s32.totalorder %s14, 1
    %p75 = por %p73, %p74
    %p77 = scmp.ne.s32.totalorder %s60, %s76
    %p78 = scmp.eq.s32.totalorder %s14, 0
    %p79 = por %p77, %p78
    %s80 = ssub.s32 %s16, %s23
    %s81 = ssub.s32 %s15, %s27
    %s82 = sor.u32 %s80, %s81
    %p83 = scmp.eq.s32.totalorder %s82, 0
    %s85 = sadd.s32 %s84, 1
    %s86 = scalar_select %p83, %s84, %s85
    %p89 = pneg %p83
    %p90 = scmp.eq.s32.totalorder %s8, 1
    %p91 = por %p89, %p90
    %p92 = scmp.ne.s32.totalorder %s84, %s87
    %p93 = scmp.eq.s32.totalorder %s8, 0
    %p94 = por %p92, %p93
    %p95 = scmp.ne.s32.totalorder %s84, %s87
    %p96 = scmp.eq.s32.totalorder %s13, 1
    %p97 = por %p95, %p96
    %p98 = scmp.ne.s32.totalorder %s87, %s88
    %p99 = scmp.eq.s32.totalorder %s13, 0
    %p100 = por %p98, %p99
    %p101 = scmp.ne.s32.totalorder %s87, %s88
    %p102 = scmp.eq.s32.totalorder %s14, 1
    %p103 = por %p101, %p102
    %p105 = scmp.ne.s32.totalorder %s88, %s104
    %p106 = scmp.eq.s32.totalorder %s14, 0
    %p107 = por %p105, %p106
    %p108 = scmp.le.s32.totalorder 1, %s8
    %p109 = scmp.lt.s32.totalorder %s8, 3
    %p110 = pnand %p108, %p109
    %p111 = pneg %p110
    // Predicated region
    $region9: #{tpu_custom_call.1} parent=5 // pred_check
      _
    $region10: #{tpu_custom_call.1} parent=5 // pred_check_branch
      %113 = sbr.rel (%p110) target = $region12
    $region11: #{tpu_custom_call.1} parent=5 // pred_region
      %s114 = ssub.s32 %s8, 1
      // Predicated region
      $region13: #{tpu_custom_call.1} parent=11 // pred_check
        %p115 = pneg %p72
      $region14: #{tpu_custom_call.1} parent=11 // pred_check_branch
        %117 = sbr.rel (%p115) target = $region16
      $region15: #{tpu_custom_call.1} parent=11 // pred_region
        %s118 = smul.u32 4, %s17
        %p119 = scmp.lt.s32.totalorder %s118, 3
        %s120 = scalar_select %p119, %s118, 3
        %s121 = smul.addr %s120, 4
        %s122 = scalar_lea.vmem %s1, %s121
        %s123 = smul.u32 4, %s17
      $region16: #{tpu_custom_call.1} parent=11 // pred_fallthru
        _
    $region12: #{tpu_custom_call.1} parent=5 // pred_fallthru
      _
    %p124 = scmp.lt.s32.totalorder %s8, 2
    // Predicated region
    $region17: #{tpu_custom_call.1} parent=5 // pred_check
      %p125 = pneg %p124
    $region18: #{tpu_custom_call.1} parent=5 // pred_check_branch
      %127 = sbr.rel (%p125) target = $region20
    $region19: #{tpu_custom_call.1} parent=5 // pred_region
      // Predicated region
      $region21: #{tpu_custom_call.1} parent=19 // pred_check
        %p128 = pneg %p40
      $region22: #{tpu_custom_call.1} parent=19 // pred_check_branch
        %130 = sbr.rel (%p128) target = $region24
      $region23: #{tpu_custom_call.1} parent=19 // pred_region
        %p131 = scmp.lt.s32.totalorder %s16, 1
        %s132 = scalar_select %p131, %s16, 1
        %s133 = smul.addr %s132, 4
        %s134 = scalar_lea.vmem %s0, %s133
      $region24: #{tpu_custom_call.1} parent=19 // pred_fallthru
        _
    $region20: #{tpu_custom_call.1} parent=5 // pred_fallthru
      _
    %p135 = scmp.le.s32.totalorder 1, %s8
    %p136 = scmp.lt.s32.totalorder %s8, 3
    %p137 = pnand %p135, %p136
    %p138 = pneg %p137
    // Predicated region
    $region25: #{tpu_custom_call.1} parent=5 // pred_check
      _
    $region26: #{tpu_custom_call.1} parent=5 // pred_check_branch
      %140 = sbr.rel (%p137) target = $region28
    $region27: #{tpu_custom_call.1} parent=5 // pred_region
      %s141 = ssub.s32 %s8, 1
      %p142 = scmp.lt.s32.totalorder %s18, 1
      %s143 = scalar_select %p142, %s18, 1
      %s144 = smul.addr %s143, 4
      %s145 = scalar_lea.vmem %s0, %s144
      %p146 = pneg %p46
      %p147 = pneg %p43
      %s148 = smul.u32 4, %s17
      %p149 = scmp.lt.s32.totalorder %s148, 3
      %s150 = scalar_select %p149, %s148, 3
      %s151 = smul.addr %s150, 4
      %s152 = scalar_lea.vmem %s1, %s151
      %p153 = pneg %p72
      %p154 = pneg %p69
      %p155 = pneg %p100
      %p156 = pneg %p97
      %s157 = smul.u32 4, %s17
      %p158 = scmp.lt.s32.totalorder %s18, 1
      %s159 = scalar_select %p158, %s18, 1
      %p160 = scmp.lt.s32.totalorder %s157, 3
      %s161 = scalar_select %p160, %s157, 3
      %s162 = smul.addr %s159, 4
      %s163 = sadd.s32 %s161, %s162
      %s164 = smul.addr %s163, 4
      %s165 = scalar_lea.vmem %s2, %s164
      %p166 = scmp.lt.s32.totalorder %s18, 1
      %s167 = scalar_select %p166, %s18, 1
      %s168 = smul.addr %s167, 4
      %s169 = scalar_lea.vmem %s0, %s168
      %s170 = smul.u32 4, %s17
      %p171 = scmp.lt.s32.totalorder %s170, 3
      %s172 = scalar_select %p171, %s170, 3
      %s173 = smul.addr %s172, 4
      %s174 = scalar_lea.vmem %s1, %s173
      %s175 = smul.u32 4, %s17
      %s176 = smul.u32 4, %s17
      %p177 = scmp.lt.s32.totalorder %s18, 1
      %s178 = scalar_select %p177, %s18, 1
      %p179 = scmp.lt.s32.totalorder %s176, 3
      %s180 = scalar_select %p179, %s176, 3
      %s181 = smul.addr %s178, 4
      %s182 = sadd.s32 %s180, %s181
      %s183 = smul.addr %s182, 4
      %s184 = scalar_lea.vmem %s2, %s183
      %s185 = smul.u32 4, %s17
      %v186 = vld [vmem:[%s169] sm:$0x7]
      %v187 = vld [vmem:[%s174] sm:$0x77]
      %v188 = vld [vmem:[%s174 + $0x8] sm:$0x77]
      %190 = vset.pattern.permute.xlu0 0
      %191 = vperm.xlu0 %190, %v186
      %v192 = vpop.permute.xlu0 %191
      %v196 = vlaneseq
      %v197 = vshrl.u32 %v196, 7
      %v198 = vsub.s32 0, %v197
      %v199 = vrot.slane %v187, %v198
      %v200 = vlaneseq
      %v201 = vshrl.u32 %v200, 7
      %v202 = vsub.s32 4, %v201
      %v203 = vrot.slane %v187, %v202
      %v204 = vlaneseq
      %v205 = vshrl.u32 %v204, 7
      %v206 = vsub.s32 0, %v205
      %v207 = vrot.slane %v188, %v206
      %v208 = vlaneseq
      %v209 = vshrl.u32 %v208, 7
      %v210 = vsub.s32 4, %v209
      %v211 = vrot.slane %v188, %v210
      %v216 = vlaneseq
      %v217 = vshrl.u32 %v216, 7
      %v218 = vsub.s32 0, %v217
      %v219 = vrot.slane %v199, %v218
      %v220 = vlaneseq
      %v221 = vshrl.u32 %v220, 7
      %v222 = vsub.s32 0, %v221
      %v223 = vrot.slane %v203, %v222
      %v224 = vlaneseq
      %v225 = vshrl.u32 %v224, 7
      %v226 = vsub.s32 0, %v225
      %v227 = vrot.slane %v207, %v226
      %v228 = vlaneseq
      %v229 = vshrl.u32 %v228, 7
      %v230 = vsub.s32 0, %v229
      %v231 = vrot.slane %v211, %v230
      %v232 = vmul.f32 %v192, %v219
      %v233 = vmul.f32 %v192, %v223
      %v234 = vmul.f32 %v192, %v227
      %v235 = vmul.f32 %v192, %v231
      %236 = vset.pattern.permute.xlu0 1
      %237 = vperm.xlu0 %236, %v186
      %v238 = vpop.permute.xlu0 %237
      %v240 = vlaneseq
      %v241 = vshrl.u32 %v240, 7
      %v242 = vsub.s32 1, %v241
      %v243 = vrot.slane %v187, %v242
      %v244 = vlaneseq
      %v245 = vshrl.u32 %v244, 7
      %v246 = vsub.s32 5, %v245
      %v247 = vrot.slane %v187, %v246
      %v248 = vlaneseq
      %v249 = vshrl.u32 %v248, 7
      %v250 = vsub.s32 1, %v249
      %v251 = vrot.slane %v188, %v250
      %v252 = vlaneseq
      %v253 = vshrl.u32 %v252, 7
      %v254 = vsub.s32 5, %v253
      %v255 = vrot.slane %v188, %v254
      %v260 = vlaneseq
      %v261 = vshrl.u32 %v260, 7
      %v262 = vsub.s32 1, %v261
      %v263 = vrot.slane %v243, %v262
      %v264 = vlaneseq
      %v265 = vshrl.u32 %v264, 7
      %v266 = vsub.s32 1, %v265
      %v267 = vrot.slane %v247, %v266
      %v268 = vlaneseq
      %v269 = vshrl.u32 %v268, 7
      %v270 = vsub.s32 1, %v269
      %v271 = vrot.slane %v251, %v270
      %v272 = vlaneseq
      %v273 = vshrl.u32 %v272, 7
      %v274 = vsub.s32 1, %v273
      %v275 = vrot.slane %v255, %v274
      %v276 = vmul.f32 %v238, %v263
      %v277 = vmul.f32 %v238, %v267
      %v278 = vmul.f32 %v238, %v271
      %v279 = vmul.f32 %v238, %v275
      %v280 = vadd.f32 %v232, %v276
      %v281 = vadd.f32 %v233, %v277
      %v282 = vadd.f32 %v234, %v278
      %v283 = vadd.f32 %v235, %v279
      %284 = vset.pattern.permute.xlu0 2
      %285 = vperm.xlu0 %284, %v186
      %v286 = vpop.permute.xlu0 %285
      %v288 = vlaneseq
      %v289 = vshrl.u32 %v288, 7
      %v290 = vsub.s32 2, %v289
      %v291 = vrot.slane %v187, %v290
      %v292 = vlaneseq
      %v293 = vshrl.u32 %v292, 7
      %v294 = vsub.s32 6, %v293
      %v295 = vrot.slane %v187, %v294
      %v296 = vlaneseq
      %v297 = vshrl.u32 %v296, 7
      %v298 = vsub.s32 2, %v297
      %v299 = vrot.slane %v188, %v298
      %v300 = vlaneseq
      %v301 = vshrl.u32 %v300, 7
      %v302 = vsub.s32 6, %v301
      %v303 = vrot.slane %v188, %v302
      %v308 = vlaneseq
      %v309 = vshrl.u32 %v308, 7
      %v310 = vsub.s32 2, %v309
      %v311 = vrot.slane %v291, %v310
      %v312 = vlaneseq
      %v313 = vshrl.u32 %v312, 7
      %v314 = vsub.s32 2, %v313
      %v315 = vrot.slane %v295, %v314
      %v316 = vlaneseq
      %v317 = vshrl.u32 %v316, 7
      %v318 = vsub.s32 2, %v317
      %v319 = vrot.slane %v299, %v318
      %v320 = vlaneseq
      %v321 = vshrl.u32 %v320, 7
      %v322 = vsub.s32 2, %v321
      %v323 = vrot.slane %v303, %v322
      %v324 = vmul.f32 %v286, %v311
      %v325 = vmul.f32 %v286, %v315
      %v326 = vmul.f32 %v286, %v319
      %v327 = vmul.f32 %v286, %v323
      %v328 = vadd.f32 %v280, %v324
      %v329 = vadd.f32 %v281, %v325
      %v330 = vadd.f32 %v282, %v326
      %v331 = vadd.f32 %v283, %v327
      %v336 = vcombine.low %v328, %v329
      %v337 = vcombine.low %v330, %v331
      %340 = vst [vmem:[%s184] sm:$0x77] %v336
      %341 = vst [vmem:[%s184 + $0x8] sm:$0x77] %v337
      %s342 = smul.u32 4, %s17
      %p343 = scmp.lt.s32.totalorder %s18, 1
      %s344 = scalar_select %p343, %s18, 1
      %p345 = scmp.lt.s32.totalorder %s342, 3
      %s346 = scalar_select %p345, %s342, 3
      %s347 = smul.addr %s344, 4
      %s348 = sadd.s32 %s346, %s347
      %s349 = smul.addr %s348, 4
      %s350 = scalar_lea.vmem %s2, %s349
      // Predicated region
      $region29: #{tpu_custom_call.1} parent=27 // pred_check
        %p351 = pneg %p97
      $region30: #{tpu_custom_call.1} parent=27 // pred_check_branch
        %353 = sbr.rel (%p351) target = $region32
      $region31: #{tpu_custom_call.1} parent=27 // pred_region
        %s354 = smul.u32 4, %s17
      $region32: #{tpu_custom_call.1} parent=27 // pred_fallthru
        _
    $region28: #{tpu_custom_call.1} parent=5 // pred_fallthru
      _
    %p355 = scmp.le.s32.totalorder 2, %s8
    // Predicated region
    $region33: #{tpu_custom_call.1} parent=5 // pred_check
      %p356 = pneg %p355
    $region34: #{tpu_custom_call.1} parent=5 // pred_check_branch
      %358 = sbr.rel (%p356) target = $region36
    $region35: #{tpu_custom_call.1} parent=5 // pred_region
      %s359 = ssub.s32 %s8, 2
      // Predicated region
      $region37: #{tpu_custom_call.1} parent=35 // pred_check
        %p360 = pneg %p103
      $region38: #{tpu_custom_call.1} parent=35 // pred_check_branch
        %362 = sbr.rel (%p360) target = $region40
      $region39: #{tpu_custom_call.1} parent=35 // pred_region
        %s363 = smul.u32 4, %s19
        %p364 = scmp.lt.s32.totalorder %s20, 1
        %s365 = scalar_select %p364, %s20, 1
        %p366 = scmp.lt.s32.totalorder %s363, 3
        %s367 = scalar_select %p366, %s363, 3
        %s368 = smul.addr %s365, 4
        %s369 = sadd.s32 %s367, %s368
        %s370 = smul.addr %s369, 4
        %s371 = scalar_lea.vmem %s2, %s370
      $region40: #{tpu_custom_call.1} parent=35 // pred_fallthru
        _
    $region36: #{tpu_custom_call.1} parent=5 // pred_fallthru
      _
  $region6: #{tpu_custom_call.1} parent=0 // loop_footer
    %s12 = sadd.s32 1, %s8
  $region7: #{tpu_custom_call.1} parent=0 // loop_footer_branch
    %7 = sbr.rel target = $region3
  $region8: #{tpu_custom_call.1} parent=0 // loop_exit
    _

</llo_original>
